<compile_context>
chip_gen: v7x
topology: tpu7x:2x2x1
jax: 0.10.0
libtpu: 0.0.40
codegen_flags: <defaults>
</compile_context>

<pallas_src>
import functools

import jax
import jax.numpy as jnp
from jax.experimental import pallas as pl
from jax.experimental.pallas import tpu as pltpu

SUBLANE = 8
_TILE_M = 1024  # large-M tile; sweep 512-2048, per-step VMEM is tiny either way


def _round_up(x, m):
    return ((x + m - 1) // m) * m


def _choose_tiling(M, tile_m=_TILE_M):
    """Tile only the M axis. Prefer an even tile count (v7x: 2 TensorCores)."""
    num = pl.cdiv(M, tile_m)
    if num > 1 and num % 2 == 1:
        num_target = num + 1
        tile_m = _round_up(pl.cdiv(M, num_target), SUBLANE)
        num = pl.cdiv(M, tile_m)
    return tile_m, num


# ----------------------------------------------------------------------------
# Fused kernel: refs = (x_ref, w1, b1, w2, b2, ..., wN, bN, o_ref)
# ----------------------------------------------------------------------------
def _fused_mlp_kernel(*refs, n_layers):
    x_ref = refs[0]
    o_ref = refs[-1]
    p = refs[1:-1]
    h = x_ref[...]
    for i in range(n_layers):
        w = p[2 * i][...]        # (in_i, out_i); f32 or bf16 (MXU operand dtype)
        b = p[2 * i + 1][...]    # (1, out_i);   f32
        # MXU matmul, f32 accumulation; cast the activation to the weight dtype
        # (no-op for the f32 path).
        h = jnp.dot(h.astype(w.dtype), w, preferred_element_type=jnp.float32)
        h = h + b                # bias-add / ReLU stay f32 (v5e: no bf16 VPU)
        if i < n_layers - 1:
            h = jnp.maximum(h, 0.0)
    o_ref[...] = h.astype(o_ref.dtype)
    # TODO(synk): if bundle dumps ever show ld/st slot_util > 50% at large
    # tile_m, add an inner unrolled fori_loop over 128-row sub-blocks so each
    # layer chain stays in vregs.


# ----------------------------------------------------------------------------
# Parameters (nn.Linear equivalent, stored transposed) and one-time prep.
# ----------------------------------------------------------------------------
def init_mlp_params(key, inplanes, hidden_planes, planes, layer_nums,
                    dtype=jnp.float32):
    """PyTorch Linear i has weight (out_i, in_i) and bias (out_i,).  We store
    the weight transposed (in_i, out_i) and the bias as (1, out_i)."""
    h = [hidden_planes] * (layer_nums - 1)
    dims_in = [inplanes] + h
    dims_out = h + [planes]
    params = []
    for n_in, n_out in zip(dims_in, dims_out):
        key, kw, kb = jax.random.split(key, 3)
        w_t = (jax.random.normal(kw, (n_in, n_out), dtype=jnp.float32)
               * 0.02).astype(dtype)
        b = (jax.random.normal(kb, (1, n_out), dtype=jnp.float32)
             * 0.02).astype(dtype)
        params.append((w_t, b))
    return params


def prepare_params(params, compute_dtype=jnp.float32):
    """Cast MXU operands (weights) once, outside the hot path.  Biases stay
    f32 so bias-add/ReLU remain f32.  Use jnp.bfloat16 on v6e/v7x for the
    fast MXU path; keep jnp.float32 for exact nn.Linear numerics."""
    return [(w.astype(compute_dtype), b.astype(jnp.float32)) for w, b in params]


# ----------------------------------------------------------------------------
# Forward pass: one fused pallas_call, no wrapper-side pad/slice ops.
# ----------------------------------------------------------------------------
@jax.jit
def mlp_forward(x, params):
    """x: (..., inplanes) -> (..., planes). ReLU between all but last layer."""
    lead_shape = x.shape[:-1]
    k_in = x.shape[-1]
    x2d = x.reshape(-1, k_in)
    M = x2d.shape[0]

    n_layers = len(params)
    planes = params[-1][0].shape[1]

    flat_params = []
    for w, b in params:
        flat_params += [w, b]

    kernel = functools.partial(_fused_mlp_kernel, n_layers=n_layers)
    vmem_spec = pl.BlockSpec(memory_space=pltpu.MemorySpace.VMEM)

    if M <= _TILE_M:
        # Small M (the real SAM case, M = batch*tokens): launch/DMA-bound.
        # Grid-less call, every operand a full-extent VMEM block (bypasses the
        # (8,128) constraint), no wrapper pad/slice ops at all.
        out = pl.pallas_call(
            kernel,
            out_shape=jax.ShapeDtypeStruct((M, planes), x.dtype),
            in_specs=[vmem_spec] * (1 + 2 * n_layers),
            out_specs=vmem_spec,
        )(x2d, *flat_params)
    else:
        # Large M: tile only M; ragged last tile handled by Pallas' masked
        # stores (no padded HBM copy of x).  Weights/biases are grid-invariant
        # full-array VMEM residents.  M axis is "parallel" for v7x's 2 TCs.
        tile_m, num_tiles = _choose_tiling(M)
        in_specs = [pl.BlockSpec((tile_m, k_in), lambda i: (i, 0))]
        in_specs += [vmem_spec] * (2 * n_layers)
        out = pl.pallas_call(
            kernel,
            out_shape=jax.ShapeDtypeStruct((M, planes), x.dtype),
            grid=(num_tiles,),
            in_specs=in_specs,
            out_specs=pl.BlockSpec((tile_m, planes), lambda i: (i, 0)),
            compiler_params=pltpu.CompilerParams(
                dimension_semantics=("parallel",)),
        )(x2d, *flat_params)

    return out.reshape(*lead_shape, planes)


# ----------------------------------------------------------------------------
# Pure-JAX reference (f32, nn.Linear-equivalent).
# ----------------------------------------------------------------------------
def mlp_forward_ref(x, params):
    h = x.reshape(-1, x.shape[-1])
    n = len(params)
    for i, (w, b) in enumerate(params):
        h = h @ w + b
        if i < n - 1:
            h = jnp.maximum(h, 0.0)
    return h.reshape(*x.shape[:-1], h.shape[-1])


if __name__ == "__main__":
    # SAM MLP head shapes: inplanes=32, hidden_planes=64, planes=16, 3 layers.
    inplanes, hidden_planes, planes, layer_nums = 32, 64, 16, 3
    batch, tokens = 2, 8

    key = jax.random.PRNGKey(0)
    key, kx = jax.random.split(key)
    x = jax.random.normal(kx, (batch, tokens, inplanes), dtype=jnp.float32)
    params = init_mlp_params(key, inplanes, hidden_planes, planes, layer_nums)
    ref = mlp_forward_ref(x, params)

    # 1) f32 MXU operands (exact nn.Linear semantics), small-M fused path.
    out = jax.block_until_ready(mlp_forward(x, prepare_params(params)))
    assert out.shape == (batch, tokens, planes), out.shape
    assert jnp.allclose(out, ref, atol=1e-5, rtol=1e-5), "f32 mismatch vs ref"

    # 2) bf16 MXU operands (v6e/v7x fast path): f32 accumulation, f32 bias/ReLU.
    out_bf16 = jax.block_until_ready(
        mlp_forward(x, prepare_params(params, jnp.bfloat16)))
    assert out_bf16.shape == (batch, tokens, planes), out_bf16.shape
    assert jnp.allclose(out_bf16, ref, atol=2e-3, rtol=2e-2), "bf16 mismatch"

    # 3) Exercise the tiled large-M path (even tile count, ragged last tile).
    key, kx2 = jax.random.split(key)
    x_big = jax.random.normal(kx2, (1, 1300, inplanes), dtype=jnp.float32)
    out_big = jax.block_until_ready(mlp_forward(x_big, prepare_params(params)))
    ref_big = mlp_forward_ref(x_big, params)
    assert out_big.shape == (1, 1300, planes), out_big.shape
    assert jnp.allclose(out_big, ref_big, atol=1e-5, rtol=1e-5), "tiled mismatch"

    print("KERNEL_OK")
</pallas_src>

<mosaic_0001>
module attributes {stable_mosaic.version = 11 : i64} {
  func.func @_fused_mlp_kernel(%arg0: memref<16x32xf32, #tpu.memory_space<vmem>>, %arg1: memref<32x64xf32, #tpu.memory_space<vmem>>, %arg2: memref<1x64xf32, #tpu.memory_space<vmem>>, %arg3: memref<64x64xf32, #tpu.memory_space<vmem>>, %arg4: memref<1x64xf32, #tpu.memory_space<vmem>>, %arg5: memref<64x16xf32, #tpu.memory_space<vmem>>, %arg6: memref<1x16xf32, #tpu.memory_space<vmem>>, %arg7: memref<16x16xf32, #tpu.memory_space<vmem>>) attributes {dimension_semantics = [], scalar_prefetch = 0 : i64, scratch_operands = 0 : i64, tpu.core_type = #tpu.core_type<tc>} {
    %c0 = arith.constant 0 : index
    %c0_0 = arith.constant 0 : index
    %0 = vector.load %arg0[%c0, %c0_0] : memref<16x32xf32, #tpu.memory_space<vmem>>, vector<16x32xf32>
    %c0_1 = arith.constant 0 : index
    %c0_2 = arith.constant 0 : index
    %1 = vector.load %arg1[%c0_1, %c0_2] : memref<32x64xf32, #tpu.memory_space<vmem>>, vector<32x64xf32>
    %c0_3 = arith.constant 0 : index
    %c0_4 = arith.constant 0 : index
    %2 = vector.load %arg2[%c0_3, %c0_4] : memref<1x64xf32, #tpu.memory_space<vmem>>, vector<1x64xf32>
    %cst = arith.constant dense<0.000000e+00> : vector<16x64xf32>
    %3 = tpu.matmul %0, %1, %cst {dimension_numbers = #tpu.dot_dimension_numbers<[1], [0], [0], [1], [0, 0, 1, 1], [], []>} : vector<16x32xf32>, vector<32x64xf32>, vector<16x64xf32> -> vector<16x64xf32>
    %4 = vector.broadcast %2 : vector<1x64xf32> to vector<16x64xf32>
    %5 = arith.addf %3, %4 : vector<16x64xf32>
    %cst_5 = arith.constant 0.000000e+00 : f32
    %6 = vector.broadcast %cst_5 : f32 to vector<16x64xf32>
    %7 = arith.maximumf %5, %6 : vector<16x64xf32>
    %c0_6 = arith.constant 0 : index
    %c0_7 = arith.constant 0 : index
    %8 = vector.load %arg3[%c0_6, %c0_7] : memref<64x64xf32, #tpu.memory_space<vmem>>, vector<64x64xf32>
    %c0_8 = arith.constant 0 : index
    %c0_9 = arith.constant 0 : index
    %9 = vector.load %arg4[%c0_8, %c0_9] : memref<1x64xf32, #tpu.memory_space<vmem>>, vector<1x64xf32>
    %cst_10 = arith.constant dense<0.000000e+00> : vector<16x64xf32>
    %10 = tpu.matmul %7, %8, %cst_10 {dimension_numbers = #tpu.dot_dimension_numbers<[1], [0], [0], [1], [0, 0, 1, 1], [], []>} : vector<16x64xf32>, vector<64x64xf32>, vector<16x64xf32> -> vector<16x64xf32>
    %11 = vector.broadcast %9 : vector<1x64xf32> to vector<16x64xf32>
    %12 = arith.addf %10, %11 : vector<16x64xf32>
    %cst_11 = arith.constant 0.000000e+00 : f32
    %13 = vector.broadcast %cst_11 : f32 to vector<16x64xf32>
    %14 = arith.maximumf %12, %13 : vector<16x64xf32>
    %c0_12 = arith.constant 0 : index
    %c0_13 = arith.constant 0 : index
    %15 = vector.load %arg5[%c0_12, %c0_13] : memref<64x16xf32, #tpu.memory_space<vmem>>, vector<64x16xf32>
    %c0_14 = arith.constant 0 : index
    %c0_15 = arith.constant 0 : index
    %16 = vector.load %arg6[%c0_14, %c0_15] : memref<1x16xf32, #tpu.memory_space<vmem>>, vector<1x16xf32>
    %cst_16 = arith.constant dense<0.000000e+00> : vector<16x16xf32>
    %17 = tpu.matmul %14, %15, %cst_16 {dimension_numbers = #tpu.dot_dimension_numbers<[1], [0], [0], [1], [0, 0, 1, 1], [], []>} : vector<16x64xf32>, vector<64x16xf32>, vector<16x16xf32> -> vector<16x16xf32>
    %18 = vector.broadcast %16 : vector<1x16xf32> to vector<16x16xf32>
    %19 = arith.addf %17, %18 : vector<16x16xf32>
    %c0_17 = arith.constant 0 : index
    %c0_18 = arith.constant 0 : index
    %20 = vector.load %arg7[%c0_17, %c0_18] : memref<16x16xf32, #tpu.memory_space<vmem>>, vector<16x16xf32>
    tpu.vector_store %arg7[%c0_17, %c0_18], %19 {strides = array<i32>} : memref<16x16xf32, #tpu.memory_space<vmem>>, vector<16x16xf32>,
    return
  }
}

</mosaic_0001>

<llo_original>
// kernel: mlp_forward.1
$region0: #{mlp_forward.1}
  #allocation0 [shape = 'u32[]', space=smem, size = 0x4, offset = 0x4, fixed_abs, tag = 'smem constant byte address 0x4 - core index']
  #allocation1 [shape = 'u32[144,128]{1,0:T(1,128)}', space=vmem, size = 0x12000, scoped, tag = 'internal scratch']
  %s0 = inlined_call_operand.vmem [shape: f32[16,32], index: 0, kind: input, shape index: {}]
  %s1 = inlined_call_operand.hbm [shape: f32[32,64], index: 1, kind: input, shape index: {}]
  %s2 = inlined_call_operand.vmem [shape: f32[1,64], index: 2, kind: input, shape index: {}]
  %s3 = inlined_call_operand.vmem [shape: f32[64,64], index: 3, kind: input, shape index: {}]
  %s4 = inlined_call_operand.vmem [shape: f32[1,64], index: 4, kind: input, shape index: {}]
  %s5 = inlined_call_operand.vmem [shape: f32[64,16], index: 5, kind: input, shape index: {}]
  %s6 = inlined_call_operand.vmem [shape: f32[1,16], index: 6, kind: input, shape index: {}]
  %s7 = inlined_call_operand.hbm [shape: f32[16,16], index: 7, kind: output, shape index: {}]
  %s8 = sld [smem:[#allocation0]]
  $region42: #{mlp_forward.1} parent=0
    _
  %s10 = ssub.s32 1, %s8
  %s11 = scalar_select 0, %s10, %s8
  $region1: #{mlp_forward.1} parent=0
    #allocation2 [shape = 'u8[16384]{0}', space=vmem, size = 0x4000, scoped, tag = 'input window, operand 1, single buffered']
    #allocation3 [shape = 's32[1]{0}', space=sflag, size = 0x4, scoped, tag = 'scoped memory for mlp_forward.1']
    #allocation4 [shape = 's32[1]{0}', space=sflag, size = 0x4, scoped, tag = 'scoped memory for mlp_forward.1']
    #allocation5 [shape = 'u8[8192]{0}', space=vmem, size = 0x2000, scoped, tag = 'output window, operand 0, single buffered']
    %12 = vsyncpa [#allocation3], 0
    %13 = vsyncpa [#allocation4], 0
    // Predicated region
    $region2: #{mlp_forward.1} parent=1 // pred_check
      _
    $region3: #{mlp_forward.1} parent=1 // pred_check_branch
      %15 = sbr.rel (0) target = $region5
    $region4: #{mlp_forward.1} parent=1 // pred_region
      _
    $region5: #{mlp_forward.1} parent=1 // pred_fallthru
      _
    // Predicated region
    $region6: #{mlp_forward.1} parent=1 // pred_check
      _
    $region7: #{mlp_forward.1} parent=1 // pred_check_branch
      %17 = sbr.rel (0) target = $region9
    $region8: #{mlp_forward.1} parent=1 // pred_region
      %s19 = ssub.s32 512, 512
      %20 = vsyncadd [#allocation3], %s19
      %s21 = sshll.u32 [#allocation2], 4
      %s22 = int_to_ptr.vmem [resolvable:$true] %s21
      %27 = dma.hbm_to_vmem [thread:$0]  %s1, 512, %s22, [#allocation3], 128, 128, 8
    $region9: #{mlp_forward.1} parent=1 // pred_fallthru
      _
    // Predicated region
    $region10: #{mlp_forward.1} parent=1 // pred_check
      _
    $region11: #{mlp_forward.1} parent=1 // pred_check_branch
      %29 = sbr.rel (0) target = $region13
    $region12: #{mlp_forward.1} parent=1 // pred_region
      _
    $region13: #{mlp_forward.1} parent=1 // pred_fallthru
      _
    // Predicated region
    $region14: #{mlp_forward.1} parent=1 // pred_check
      _
    $region15: #{mlp_forward.1} parent=1 // pred_check_branch
      %31 = sbr.rel (0) target = $region17
    $region16: #{mlp_forward.1} parent=1 // pred_region
      _
    $region17: #{mlp_forward.1} parent=1 // pred_fallthru
      _
    // Predicated region
    $region18: #{mlp_forward.1} parent=1 // pred_check
      _
    $region19: #{mlp_forward.1} parent=1 // pred_check_branch
      %33 = sbr.rel (0) target = $region21
    $region20: #{mlp_forward.1} parent=1 // pred_region
      _
    $region21: #{mlp_forward.1} parent=1 // pred_fallthru
      _
    // Predicated region
    $region22: #{mlp_forward.1} parent=1 // pred_check
      _
    $region23: #{mlp_forward.1} parent=1 // pred_check_branch
      %35 = sbr.rel (0) target = $region25
    $region24: #{mlp_forward.1} parent=1 // pred_region
      _
    $region25: #{mlp_forward.1} parent=1 // pred_fallthru
      _
    // Predicated region
    $region26: #{mlp_forward.1} parent=1 // pred_check
      _
    $region27: #{mlp_forward.1} parent=1 // pred_check_branch
      %37 = sbr.rel (0) target = $region29
    $region28: #{mlp_forward.1} parent=1 // pred_region
      _
    $region29: #{mlp_forward.1} parent=1 // pred_fallthru
      _
    // Predicated region
    $region30: #{mlp_forward.1} parent=1 // pred_check
      _
    $region31: #{mlp_forward.1} parent=1 // pred_check_branch
      %39 = sbr.rel (0) target = $region33
    $region32: #{mlp_forward.1} parent=1 // pred_region
      %40 = dma.done [#allocation3], 512
    $region33: #{mlp_forward.1} parent=1 // pred_fallthru
      _
    %v41 = vld [vmem:[%s0] sm:$0xff]
    %v42 = vld [vmem:[%s0 + $0x8] sm:$0xff]
    %v43 = vld [vmem:[#allocation2] sm:$0xff]
    %v44 = vld [vmem:[#allocation2 + $0x8] sm:$0xff]
    %v45 = vld [vmem:[#allocation2 + $0x10] sm:$0xff]
    %v46 = vld [vmem:[#allocation2 + $0x18] sm:$0xff]
    %v47 = vld [vmem:[%s2] sm:$0x1]
    %v49 = vlaneseq
    %v50 = vshrl.u32 %v49, 7
    %v51 = vsub.s32 0, %v50
    %v52 = vrot.slane %v47, %v51
    %vm54 = vcmask 261120
    %v56 = vsel %vm54, %v41, 0
    %v59 = vsel %vm54, %v42, 0
    %61 = vmatprep.subr.mxu0 0.0
    %62 = vmatpush1.msra.mxu0 %v43
    %63 = vmatprep.subr.mxu0 0.0
    %64 = vmatpush1.msra.mxu0 %v44
    %65 = vmatprep.subr.mxu0 0.0
    %66 = vmatpush1.msra.mxu0 %v45
    %67 = vmatprep.subr.mxu0 0.0
    %68 = vmatpush1.msra.mxu0 %v46
    %69 = vmatprep.subr.mxu0 0.0
    %70 = vmatpush1.msra.mxu0 0.0
    %71 = vmatprep.subr.mxu0 0.0
    %72 = vmatpush1.msra.mxu0 0.0
    %73 = vmatprep.subr.mxu0 0.0
    %74 = vmatpush1.msra.mxu0 0.0
    %75 = vmatprep.subr.mxu0 0.0
    %76 = vmatpush1.msra.mxu0 0.0
    %77 = vmatprep.subr.mxu0 0.0
    %78 = vmatpush1.msra.mxu0 0.0
    %79 = vmatprep.subr.mxu0 0.0
    %80 = vmatpush1.msra.mxu0 0.0
    %81 = vmatprep.subr.mxu0 0.0
    %82 = vmatpush1.msra.mxu0 0.0
    %83 = vmatprep.subr.mxu0 0.0
    %84 = vmatpush1.msra.mxu0 0.0
    %85 = vmatprep.subr.mxu0 0.0
    %86 = vmatpush1.msra.mxu0 0.0
    %87 = vmatprep.subr.mxu0 0.0
    %88 = vmatpush1.msra.mxu0 0.0
    %89 = vmatprep.subr.mxu0 0.0
    %90 = vmatpush1.msra.mxu0 0.0
    %91 = vmatprep.subr.mxu0 0.0
    %92 = vmatpush1.msra.mxu0 0.0
    %93 = vmatprep.subr.mxu0 0.0
    %94 = vmatpush1.msra.mxu0 0.0
    %95 = vmatprep.subr.mxu0 0.0
    %96 = vmatpush1.msra.mxu0 0.0
    %97 = vmatprep.subr.mxu0 0.0
    %98 = vmatpush1.msra.mxu0 0.0
    %99 = vmatprep.subr.mxu0 0.0
    %100 = vmatpush1.msra.mxu0 0.0
    %101 = vmatprep.subr.mxu0 0.0
    %102 = vmatpush1.msra.mxu0 0.0
    %103 = vmatprep.subr.mxu0 0.0
    %104 = vmatpush1.msra.mxu0 0.0
    %105 = vmatprep.subr.mxu0 0.0
    %106 = vmatpush1.msra.mxu0 0.0
    %107 = vmatprep.subr.mxu0 0.0
    %108 = vmatpush1.msra.mxu0 0.0
    %109 = vmatprep.subr.mxu0 0.0
    %110 = vmatpush1.msra.mxu0 0.0
    %111 = vmatprep.subr.mxu0 0.0
    %112 = vmatpush1.msra.mxu0 0.0
    %113 = vmatprep.subr.mxu0 0.0
    %114 = vmatpush1.msra.mxu0 0.0
    %115 = vmatprep.subr.mxu0 0.0
    %116 = vmatpush1.msra.mxu0 0.0
    %117 = vmatprep.subr.mxu0 0.0
    %118 = vmatpush1.msra.mxu0 0.0
    %119 = vmatprep.subr.mxu0 0.0
    %120 = vmatpush1.msra.mxu0 0.0
    %121 = vmatprep.subr.mxu0 0.0
    %122 = vmatpush1.msra.mxu0 0.0
    %123 = vmatprep.subr.mxu0 0.0
    %124 = vmatpush1.msra.mxu0 0.0
    %125 = vmatprep.mubr.f32.mxu0 0.0
    %126 = vmatmul.mubr.f32.gmra.mrb[0].mxu0 %v56
    %v127 = vpop.f32.mrb[0].mxu0
    %v128 = vadd.f32 %v52, %v127
    %v129 = vpop.f32.mrb[0].mxu0
    %130 = vmatprep.mubr.f32.mxu0 0.0
    %131 = vmatmul.mubr.f32.gmra.mrb[0].mxu0 %v59
    %v132 = vpop.f32.mrb[0].mxu0
    %v133 = vadd.f32 %v52, %v132
    %v134 = vpop.f32.mrb[0].mxu0
    %135 = vdwg.mxu0
    %v136 = vmax.f32 %v128, 0.0
    %v137 = vmax.f32 %v133, 0.0
    %v138 = vld [vmem:[%s3] sm:$0xff]
    %v139 = vld [vmem:[%s3 + $0x8] sm:$0xff]
    %v140 = vld [vmem:[%s3 + $0x10] sm:$0xff]
    %v141 = vld [vmem:[%s3 + $0x18] sm:$0xff]
    %v142 = vld [vmem:[%s3 + $0x20] sm:$0xff]
    %v143 = vld [vmem:[%s3 + $0x28] sm:$0xff]
    %v144 = vld [vmem:[%s3 + $0x30] sm:$0xff]
    %v145 = vld [vmem:[%s3 + $0x38] sm:$0xff]
    %v146 = vld [vmem:[%s4] sm:$0x1]
    %v148 = vlaneseq
    %v149 = vshrl.u32 %v148, 7
    %v150 = vsub.s32 0, %v149
    %v151 = vrot.slane %v146, %v150
    %vm153 = vcmask 523264
    %v155 = vsel %vm153, %v136, 0
    %v158 = vsel %vm153, %v137, 0
    %160 = vmatprep.subr.mxu0 0.0
    %161 = vmatpush1.msra.mxu0 %v138
    %162 = vmatprep.subr.mxu0 0.0
    %163 = vmatpush1.msra.mxu0 %v139
    %164 = vmatprep.subr.mxu0 0.0
    %165 = vmatpush1.msra.mxu0 %v140
    %166 = vmatprep.subr.mxu0 0.0
    %167 = vmatpush1.msra.mxu0 %v141
    %168 = vmatprep.subr.mxu0 0.0
    %169 = vmatpush1.msra.mxu0 %v142
    %170 = vmatprep.subr.mxu0 0.0
    %171 = vmatpush1.msra.mxu0 %v143
    %172 = vmatprep.subr.mxu0 0.0
    %173 = vmatpush1.msra.mxu0 %v144
    %174 = vmatprep.subr.mxu0 0.0
    %175 = vmatpush1.msra.mxu0 %v145
    %176 = vmatprep.subr.mxu0 0.0
    %177 = vmatpush1.msra.mxu0 0.0
    %178 = vmatprep.subr.mxu0 0.0
    %179 = vmatpush1.msra.mxu0 0.0
    %180 = vmatprep.subr.mxu0 0.0
    %181 = vmatpush1.msra.mxu0 0.0
    %182 = vmatprep.subr.mxu0 0.0
    %183 = vmatpush1.msra.mxu0 0.0
    %184 = vmatprep.subr.mxu0 0.0
    %185 = vmatpush1.msra.mxu0 0.0
    %186 = vmatprep.subr.mxu0 0.0
    %187 = vmatpush1.msra.mxu0 0.0
    %188 = vmatprep.subr.mxu0 0.0
    %189 = vmatpush1.msra.mxu0 0.0
    %190 = vmatprep.subr.mxu0 0.0
    %191 = vmatpush1.msra.mxu0 0.0
    %192 = vmatprep.subr.mxu0 0.0
    %193 = vmatpush1.msra.mxu0 0.0
    %194 = vmatprep.subr.mxu0 0.0
    %195 = vmatpush1.msra.mxu0 0.0
    %196 = vmatprep.subr.mxu0 0.0
    %197 = vmatpush1.msra.mxu0 0.0
    %198 = vmatprep.subr.mxu0 0.0
    %199 = vmatpush1.msra.mxu0 0.0
    %200 = vmatprep.subr.mxu0 0.0
    %201 = vmatpush1.msra.mxu0 0.0
    %202 = vmatprep.subr.mxu0 0.0
    %203 = vmatpush1.msra.mxu0 0.0
    %204 = vmatprep.subr.mxu0 0.0
    %205 = vmatpush1.msra.mxu0 0.0
    %206 = vmatprep.subr.mxu0 0.0
    %207 = vmatpush1.msra.mxu0 0.0
    %208 = vmatprep.subr.mxu0 0.0
    %209 = vmatpush1.msra.mxu0 0.0
    %210 = vmatprep.subr.mxu0 0.0
    %211 = vmatpush1.msra.mxu0 0.0
    %212 = vmatprep.subr.mxu0 0.0
    %213 = vmatpush1.msra.mxu0 0.0
    %214 = vmatprep.subr.mxu0 0.0
    %215 = vmatpush1.msra.mxu0 0.0
    %216 = vmatprep.subr.mxu0 0.0
    %217 = vmatpush1.msra.mxu0 0.0
    %218 = vmatprep.subr.mxu0 0.0
    %219 = vmatpush1.msra.mxu0 0.0
    %220 = vmatprep.subr.mxu0 0.0
    %221 = vmatpush1.msra.mxu0 0.0
    %222 = vmatprep.subr.mxu0 0.0
    %223 = vmatpush1.msra.mxu0 0.0
    %224 = vmatprep.mubr.f32.mxu0 0.0
    %225 = vmatmul.mubr.f32.gmra.mrb[0].mxu0 %v155
    %v226 = vpop.f32.mrb[0].mxu0
    %v227 = vadd.f32 %v151, %v226
    %v228 = vpop.f32.mrb[0].mxu0
    %229 = vmatprep.mubr.f32.mxu0 0.0
    %230 = vmatmul.mubr.f32.gmra.mrb[0].mxu0 %v158
    %v231 = vpop.f32.mrb[0].mxu0
    %v232 = vadd.f32 %v151, %v231
    %v233 = vpop.f32.mrb[0].mxu0
    %234 = vdwg.mxu0
    %v235 = vmax.f32 %v227, 0.0
    %v236 = vmax.f32 %v232, 0.0
    %v237 = vld [vmem:[%s5] sm:$0xff]
    %v238 = vld [vmem:[%s5 + $0x8] sm:$0xff]
    %v239 = vld [vmem:[%s5 + $0x10] sm:$0xff]
    %v240 = vld [vmem:[%s5 + $0x18] sm:$0xff]
    %v241 = vld [vmem:[%s5 + $0x20] sm:$0xff]
    %v242 = vld [vmem:[%s5 + $0x28] sm:$0xff]
    %v243 = vld [vmem:[%s5 + $0x30] sm:$0xff]
    %v244 = vld [vmem:[%s5 + $0x38] sm:$0xff]
    %v245 = vld [vmem:[%s6] sm:$0x1]
    %v247 = vlaneseq
    %v248 = vshrl.u32 %v247, 7
    %v249 = vsub.s32 0, %v248
    %v250 = vrot.slane %v245, %v249
    %v253 = vsel %vm153, %v235, 0
    %v256 = vsel %vm153, %v236, 0
    %258 = vmatprep.subr.mxu0 0.0
    %259 = vmatpush1.msra.mxu0 %v237
    %260 = vmatprep.subr.mxu0 0.0
    %261 = vmatpush1.msra.mxu0 %v238
    %262 = vmatprep.subr.mxu0 0.0
    %263 = vmatpush1.msra.mxu0 %v239
    %264 = vmatprep.subr.mxu0 0.0
    %265 = vmatpush1.msra.mxu0 %v240
    %266 = vmatprep.subr.mxu0 0.0
    %267 = vmatpush1.msra.mxu0 %v241
    %268 = vmatprep.subr.mxu0 0.0
    %269 = vmatpush1.msra.mxu0 %v242
    %270 = vmatprep.subr.mxu0 0.0
    %271 = vmatpush1.msra.mxu0 %v243
    %272 = vmatprep.subr.mxu0 0.0
    %273 = vmatpush1.msra.mxu0 %v244
    %274 = vmatprep.subr.mxu0 0.0
    %275 = vmatpush1.msra.mxu0 0.0
    %276 = vmatprep.subr.mxu0 0.0
    %277 = vmatpush1.msra.mxu0 0.0
    %278 = vmatprep.subr.mxu0 0.0
    %279 = vmatpush1.msra.mxu0 0.0
    %280 = vmatprep.subr.mxu0 0.0
    %281 = vmatpush1.msra.mxu0 0.0
    %282 = vmatprep.subr.mxu0 0.0
    %283 = vmatpush1.msra.mxu0 0.0
    %284 = vmatprep.subr.mxu0 0.0
    %285 = vmatpush1.msra.mxu0 0.0
    %286 = vmatprep.subr.mxu0 0.0
    %287 = vmatpush1.msra.mxu0 0.0
    %288 = vmatprep.subr.mxu0 0.0
    %289 = vmatpush1.msra.mxu0 0.0
    %290 = vmatprep.subr.mxu0 0.0
    %291 = vmatpush1.msra.mxu0 0.0
    %292 = vmatprep.subr.mxu0 0.0
    %293 = vmatpush1.msra.mxu0 0.0
    %294 = vmatprep.subr.mxu0 0.0
    %295 = vmatpush1.msra.mxu0 0.0
    %296 = vmatprep.subr.mxu0 0.0
    %297 = vmatpush1.msra.mxu0 0.0
    %298 = vmatprep.subr.mxu0 0.0
    %299 = vmatpush1.msra.mxu0 0.0
    %300 = vmatprep.subr.mxu0 0.0
    %301 = vmatpush1.msra.mxu0 0.0
    %302 = vmatprep.subr.mxu0 0.0
    %303 = vmatpush1.msra.mxu0 0.0
    %304 = vmatprep.subr.mxu0 0.0
    %305 = vmatpush1.msra.mxu0 0.0
    %306 = vmatprep.subr.mxu0 0.0
    %307 = vmatpush1.msra.mxu0 0.0
    %308 = vmatprep.subr.mxu0 0.0
    %309 = vmatpush1.msra.mxu0 0.0
    %310 = vmatprep.subr.mxu0 0.0
    %311 = vmatpush1.msra.mxu0 0.0
    %312 = vmatprep.subr.mxu0 0.0
    %313 = vmatpush1.msra.mxu0 0.0
    %314 = vmatprep.subr.mxu0 0.0
    %315 = vmatpush1.msra.mxu0 0.0
    %316 = vmatprep.subr.mxu0 0.0
    %317 = vmatpush1.msra.mxu0 0.0
    %318 = vmatprep.subr.mxu0 0.0
    %319 = vmatpush1.msra.mxu0 0.0
    %320 = vmatprep.subr.mxu0 0.0
    %321 = vmatpush1.msra.mxu0 0.0
    %322 = vmatprep.mubr.f32.mxu0 0.0
    %323 = vmatmul.mubr.f32.gmra.mrb[0].mxu0 %v253
    %v324 = vpop.f32.mrb[0].mxu0
    %v325 = vadd.f32 %v250, %v324
    %v326 = vpop.f32.mrb[0].mxu0
    %327 = vmatprep.mubr.f32.mxu0 0.0
    %328 = vmatmul.mubr.f32.gmra.mrb[0].mxu0 %v256
    %v329 = vpop.f32.mrb[0].mxu0
    %v330 = vadd.f32 %v250, %v329
    %v331 = vpop.f32.mrb[0].mxu0
    %332 = vdwg.mxu0
    %vm333 = vcmask 130048
    %334 = vst.msk [vmem:[#allocation5] sm:$0xff] %vm333, %v325
    %335 = vst.msk [vmem:[#allocation5 + $0x8] sm:$0xff] %vm333, %v330
    // Predicated region
    $region34: #{mlp_forward.1} parent=1 // pred_check
      _
    $region35: #{mlp_forward.1} parent=1 // pred_check_branch
      %337 = sbr.rel (0) target = $region37
    $region36: #{mlp_forward.1} parent=1 // pred_region
      %s339 = ssub.s32 256, 256
      %340 = vsyncadd [#allocation4], %s339
      %s341 = sshll.u32 [#allocation5], 4
      %s342 = int_to_ptr.vmem [resolvable:$true] %s341
      %347 = dma.vmem_to_hbm [thread:$0]  %s342, 256, %s7, [#allocation4], 128, 128, 8
    $region37: #{mlp_forward.1} parent=1 // pred_fallthru
      _
    // Predicated region
    $region38: #{mlp_forward.1} parent=1 // pred_check
      _
    $region39: #{mlp_forward.1} parent=1 // pred_check_branch
      %349 = sbr.rel (0) target = $region41
    $region40: #{mlp_forward.1} parent=1 // pred_region
      %350 = dma.done [#allocation4], 256
    $region41: #{mlp_forward.1} parent=1 // pred_fallthru
      _
    %351 = vsyncpa [#allocation3], 1
    %352 = vsyncpa [#allocation4], 1

</llo_original>
